<compile_context>
chip_gen: v6e
topology: v6e:2x2x1
jax: 0.10.0
libtpu: 0.0.40
codegen_flags: <defaults>
</compile_context>

<pallas_src>
import math

import jax
import jax.numpy as jnp
from jax.experimental import pallas as pl
from jax.experimental.pallas import tpu as pltpu

EPS = 1e-5
TB_DEFAULT = 16384                      # batch elements per grid step
_HIGHEST = jax.lax.Precision.HIGHEST


def _cdiv(a, b):
    return -(-a // b)


def _round_up(n, m):
    return _cdiv(n, m) * m


def _controller_kernel(x_ref, w1_ref, b1_ref, w2_ref, b2_ref, w3_ref, b3_ref, o_ref):
    # x_ref : [tbr, PACK*d_in]  -- PACK batch elements packed per lane-dense row
    # wN_ref: block-diagonal expanded folded weights [PACK*in, PACK*out]
    # bN_ref: [1, PACK*out]
    x = x_ref[...]
    h = jnp.dot(x, w1_ref[...], preferred_element_type=jnp.float32) + b1_ref[...]
    h = jnp.maximum(h, 0.0)                                        # [tbr, PACK*k]
    h = jnp.dot(h, w2_ref[...], preferred_element_type=jnp.float32) + b2_ref[...]
    h = jnp.maximum(h, 0.0)                                        # [tbr, PACK*k]
    out = jnp.dot(h, w3_ref[...], preferred_element_type=jnp.float32) + b3_ref[...]
    o_ref[...] = out.astype(o_ref.dtype)                           # [tbr, PACK]


def prepare_params(p):
    """Fold inference-mode BN into the following Linear (exact), then expand the
    folded weights into block-diagonal form so PACK batch elements share one
    lane-dense matmul row."""

    def fold(w, b, g, beta, m, v):
        scale = g * jax.lax.rsqrt(v + EPS)                         # [in]
        shift = beta - m * scale                                   # [in]
        w_f = (w * scale[None, :]).astype(jnp.float32)             # [out, in]
        b_f = (b + jnp.dot(w, shift, precision=_HIGHEST)).astype(jnp.float32)
        return w_f, b_f

    w1, b1 = fold(p["w1"], p["b1"], p["bn1_g"], p["bn1_b"], p["bn1_m"], p["bn1_v"])
    w2, b2 = fold(p["w2"], p["b2"], p["bn2_g"], p["bn2_b"], p["bn2_m"], p["bn2_v"])
    w3, b3 = fold(p["w3"], p["b3"], p["bn3_g"], p["bn3_b"], p["bn3_m"], p["bn3_v"])

    d_in = w1.shape[1]
    pack = 128 // d_in if (d_in <= 128 and 128 % d_in == 0) else 1
    eye = jnp.eye(pack, dtype=jnp.float32)

    def expand(w, b):
        # [out, in] -> block-diag [pack*in, pack*out];  [out] -> [1, pack*out]
        return jnp.kron(eye, w.T), jnp.tile(b, pack).reshape(1, -1)

    w1e, b1e = expand(w1, b1)
    w2e, b2e = expand(w2, b2)
    w3e, b3e = expand(w3, b3)
    return {"w1": w1e, "b1": b1e, "w2": w2e, "b2": b2e, "w3": w3e, "b3": b3e,
            "pack": pack, "d_in": d_in}


def raw_controller_forward(x, params, *, tb=TB_DEFAULT):
    """x: [B, n_input, 2] float32 -> [B, 1] float32 (matches torch RawController)."""
    B = x.shape[0]
    x_flat = x.reshape(B, -1).astype(jnp.float32)        # torch.flatten(x, 1)
    d_in = x_flat.shape[1]
    pack = params["pack"]
    assert d_in == params["d_in"], (d_in, params["d_in"])
    width_in = pack * d_in                               # 128 for the default model
    width_out = params["w3"].shape[1]                    # pack

    # Pad only up to a multiple of PACK (no-op when B % 16 == 0), then a free
    # reshape packs PACK batch elements into each lane-dense row.
    pad = (-B) % pack
    if pad:
        x_flat = jnp.pad(x_flat, ((0, pad), (0, 0)))
    bp = B + pad
    n_rows = bp // pack
    x_packed = x_flat.reshape(n_rows, width_in)

    # Tile (in packed rows): large enough to amortize the ~0.35us per-step
    # overhead, small enough to (a) stay well inside scoped VMEM on all gens
    # and (b) keep >= ~4 grid steps on large batches so both v7x TCs get work.
    tbr_cap = max(8, tb // pack)                              # VMEM-driven cap
    tbr_split = max(256, _round_up(_cdiv(n_rows, 4), 8))      # megacore split
    tbr = min(tbr_cap, tbr_split)
    if n_rows <= tbr:
        tbr = n_rows                                          # single full-extent block
    grid = (_cdiv(n_rows, tbr),)

    const = lambda i: (0, 0)
    out = pl.pallas_call(
        _controller_kernel,
        out_shape=jax.ShapeDtypeStruct((n_rows, width_out), jnp.float32),
        grid_spec=pltpu.PrefetchScalarGridSpec(
            num_scalar_prefetch=0,
            grid=grid,
            in_specs=[
                pl.BlockSpec((tbr, width_in), lambda i: (i, 0)),   # packed x tile
                pl.BlockSpec(params["w1"].shape, const),           # W1 (BN1 folded, expanded)
                pl.BlockSpec(params["b1"].shape, const),
                pl.BlockSpec(params["w2"].shape, const),           # W2 (BN2 folded, expanded)
                pl.BlockSpec(params["b2"].shape, const),
                pl.BlockSpec(params["w3"].shape, const),           # W3 (BN3 folded, expanded)
                pl.BlockSpec(params["b3"].shape, const),
            ],
            out_specs=pl.BlockSpec((tbr, width_out), lambda i: (i, 0)),
        ),
        compiler_params=pltpu.CompilerParams(
            dimension_semantics=("parallel",),
            vmem_limit_bytes=32 * 1024 * 1024,
        ),
    )(
        x_packed,
        params["w1"], params["b1"],
        params["w2"], params["b2"],
        params["w3"], params["b3"],
    )

    return out.reshape(bp, 1)[:B]                         # [B, 1]


def make_params(key, n_input=4, k=32):
    """Torch-convention params: Linear weights [out, in], biases [out]."""
    d_in = n_input * 2
    keys = jax.random.split(key, 18)

    def lin(kw, kb, fan_in, fan_out):
        bound = 1.0 / math.sqrt(fan_in)
        w = jax.random.uniform(kw, (fan_out, fan_in), jnp.float32, -bound, bound)
        b = jax.random.uniform(kb, (fan_out,), jnp.float32, -bound, bound)
        return w, b

    def bn(kg, kb, km, kv, dim):
        g = 1.0 + 0.1 * jax.random.normal(kg, (dim,), jnp.float32)
        beta = 0.1 * jax.random.normal(kb, (dim,), jnp.float32)
        m = 0.1 * jax.random.normal(km, (dim,), jnp.float32)
        v = 1.0 + 0.1 * jax.random.uniform(kv, (dim,), jnp.float32)
        return g, beta, m, v

    w1, b1 = lin(keys[0], keys[1], d_in, k)
    w2, b2 = lin(keys[2], keys[3], k, k)
    w3, b3 = lin(keys[4], keys[5], k, 1)
    bn1 = bn(keys[6], keys[7], keys[8], keys[9], d_in)
    bn2 = bn(keys[10], keys[11], keys[12], keys[13], k)
    bn3 = bn(keys[14], keys[15], keys[16], keys[17], k)

    return {
        "bn1_g": bn1[0], "bn1_b": bn1[1], "bn1_m": bn1[2], "bn1_v": bn1[3],
        "w1": w1, "b1": b1,
        "bn2_g": bn2[0], "bn2_b": bn2[1], "bn2_m": bn2[2], "bn2_v": bn2[3],
        "w2": w2, "b2": b2,
        "bn3_g": bn3[0], "bn3_b": bn3[1], "bn3_m": bn3[2], "bn3_v": bn3[3],
        "w3": w3, "b3": b3,
    }


def reference_forward(x, p):
    """Pure-JAX mirror of the torch module (unfolded BN, inference mode)."""
    h = x.reshape(x.shape[0], -1)

    def bn(h, g, beta, m, v):
        return (h - m) * jax.lax.rsqrt(v + EPS) * g + beta

    h = bn(h, p["bn1_g"], p["bn1_b"], p["bn1_m"], p["bn1_v"])
    h = jnp.maximum(jnp.dot(h, p["w1"].T, precision=_HIGHEST) + p["b1"], 0.0)
    h = bn(h, p["bn2_g"], p["bn2_b"], p["bn2_m"], p["bn2_v"])
    h = jnp.maximum(jnp.dot(h, p["w2"].T, precision=_HIGHEST) + p["b2"], 0.0)
    h = bn(h, p["bn3_g"], p["bn3_b"], p["bn3_m"], p["bn3_v"])
    return jnp.dot(h, p["w3"].T, precision=_HIGHEST) + p["b3"]


if __name__ == "__main__":
    key = jax.random.PRNGKey(0)
    kx1, kx2, kp = jax.random.split(key, 3)

    B, n_input, k = 2, 4, 32
    params = make_params(kp, n_input=n_input, k=k)
    prepped = prepare_params(params)

    x = jax.random.normal(kx1, (B, n_input, 2), jnp.float32)
    out = jax.block_until_ready(raw_controller_forward(x, prepped))
    ref = reference_forward(x, params)
    assert out.shape == (B, 1), out.shape
    assert jnp.allclose(out, ref, atol=1e-4, rtol=1e-4), float(jnp.abs(out - ref).max())

    # Exercise the multi-step grid + partial trailing block path
    # (B not a multiple of PACK; small tile forces 3 pipelined grid steps).
    B2 = 300
    x2 = jax.random.normal(kx2, (B2, n_input, 2), jnp.float32)
    out2 = jax.block_until_ready(raw_controller_forward(x2, prepped, tb=128))
    ref2 = reference_forward(x2, params)
    assert out2.shape == (B2, 1), out2.shape
    assert jnp.allclose(out2, ref2, atol=1e-4, rtol=1e-4), float(jnp.abs(out2 - ref2).max())

    print("KERNEL_OK")
</pallas_src>

<mosaic_0001>
module attributes {stable_mosaic.version = 11 : i64} {
  func.func @_controller_kernel(%arg0: i32, %arg1: memref<1x128xf32, #tpu.memory_space<vmem>>, %arg2: memref<128x512xf32, #tpu.memory_space<vmem>>, %arg3: memref<1x512xf32, #tpu.memory_space<vmem>>, %arg4: memref<512x512xf32, #tpu.memory_space<vmem>>, %arg5: memref<1x512xf32, #tpu.memory_space<vmem>>, %arg6: memref<512x16xf32, #tpu.memory_space<vmem>>, %arg7: memref<1x16xf32, #tpu.memory_space<vmem>>, %arg8: memref<1x16xf32, #tpu.memory_space<vmem>>) attributes {dimension_semantics = [#tpu.dimension_semantics<parallel>], iteration_bounds = array<i64: 1>, scalar_prefetch = 0 : i64, scratch_operands = 0 : i64, tpu.core_type = #tpu.core_type<tc>, window_params = [{transform_indices = @transform_0, window_bounds = array<i64: 1, 128>}, {pipeline_mode = #tpu.pipeline_mode<synchronous>, transform_indices = @transform_1, window_bounds = array<i64: 128, 512>}, {pipeline_mode = #tpu.pipeline_mode<synchronous>, transform_indices = @transform_2, window_bounds = array<i64: 1, 512>}, {pipeline_mode = #tpu.pipeline_mode<synchronous>, transform_indices = @transform_3, window_bounds = array<i64: 512, 512>}, {pipeline_mode = #tpu.pipeline_mode<synchronous>, transform_indices = @transform_4, window_bounds = array<i64: 1, 512>}, {pipeline_mode = #tpu.pipeline_mode<synchronous>, transform_indices = @transform_5, window_bounds = array<i64: 512, 16>}, {pipeline_mode = #tpu.pipeline_mode<synchronous>, transform_indices = @transform_6, window_bounds = array<i64: 1, 16>}, {transform_indices = @transform_7, window_bounds = array<i64: 1, 16>}]} {
    %c0 = arith.constant 0 : index
    %c0_0 = arith.constant 0 : index
    %0 = vector.load %arg1[%c0, %c0_0] : memref<1x128xf32, #tpu.memory_space<vmem>>, vector<1x128xf32>
    %c0_1 = arith.constant 0 : index
    %c0_2 = arith.constant 0 : index
    %1 = vector.load %arg2[%c0_1, %c0_2] : memref<128x512xf32, #tpu.memory_space<vmem>>, vector<128x512xf32>
    %cst = arith.constant dense<0.000000e+00> : vector<1x512xf32>
    %2 = tpu.matmul %0, %1, %cst {dimension_numbers = #tpu.dot_dimension_numbers<[1], [0], [0], [1], [0, 0, 1, 1], [], []>} : vector<1x128xf32>, vector<128x512xf32>, vector<1x512xf32> -> vector<1x512xf32>
    %c0_3 = arith.constant 0 : index
    %c0_4 = arith.constant 0 : index
    %3 = vector.load %arg3[%c0_3, %c0_4] : memref<1x512xf32, #tpu.memory_space<vmem>>, vector<1x512xf32>
    %4 = arith.addf %2, %3 : vector<1x512xf32>
    %cst_5 = arith.constant 0.000000e+00 : f32
    %5 = vector.broadcast %cst_5 : f32 to vector<1x512xf32>
    %6 = arith.maximumf %4, %5 : vector<1x512xf32>
    %c0_6 = arith.constant 0 : index
    %c0_7 = arith.constant 0 : index
    %7 = vector.load %arg4[%c0_6, %c0_7] : memref<512x512xf32, #tpu.memory_space<vmem>>, vector<512x512xf32>
    %cst_8 = arith.constant dense<0.000000e+00> : vector<1x512xf32>
    %8 = tpu.matmul %6, %7, %cst_8 {dimension_numbers = #tpu.dot_dimension_numbers<[1], [0], [0], [1], [0, 0, 1, 1], [], []>} : vector<1x512xf32>, vector<512x512xf32>, vector<1x512xf32> -> vector<1x512xf32>
    %c0_9 = arith.constant 0 : index
    %c0_10 = arith.constant 0 : index
    %9 = vector.load %arg5[%c0_9, %c0_10] : memref<1x512xf32, #tpu.memory_space<vmem>>, vector<1x512xf32>
    %10 = arith.addf %8, %9 : vector<1x512xf32>
    %cst_11 = arith.constant 0.000000e+00 : f32
    %11 = vector.broadcast %cst_11 : f32 to vector<1x512xf32>
    %12 = arith.maximumf %10, %11 : vector<1x512xf32>
    %c0_12 = arith.constant 0 : index
    %c0_13 = arith.constant 0 : index
    %13 = vector.load %arg6[%c0_12, %c0_13] : memref<512x16xf32, #tpu.memory_space<vmem>>, vector<512x16xf32>
    %cst_14 = arith.constant dense<0.000000e+00> : vector<1x16xf32>
    %14 = tpu.matmul %12, %13, %cst_14 {dimension_numbers = #tpu.dot_dimension_numbers<[1], [0], [0], [1], [0, 0, 1, 1], [], []>} : vector<1x512xf32>, vector<512x16xf32>, vector<1x16xf32> -> vector<1x16xf32>
    %c0_15 = arith.constant 0 : index
    %c0_16 = arith.constant 0 : index
    %15 = vector.load %arg7[%c0_15, %c0_16] : memref<1x16xf32, #tpu.memory_space<vmem>>, vector<1x16xf32>
    %16 = arith.addf %14, %15 : vector<1x16xf32>
    %c0_17 = arith.constant 0 : index
    %c0_18 = arith.constant 0 : index
    %17 = vector.load %arg8[%c0_17, %c0_18] : memref<1x16xf32, #tpu.memory_space<vmem>>, vector<1x16xf32>
    tpu.vector_store %arg8[%c0_17, %c0_18], %16 {strides = array<i32>} : memref<1x16xf32, #tpu.memory_space<vmem>>, vector<1x16xf32>,
    return
  }
  func.func @transform_0(%arg0: i32) -> (i32, i32) {
    %c0_i32 = arith.constant 0 : i32
    %c0_i32_0 = arith.constant 0 : i32
    return %arg0, %c0_i32 : i32, i32
  }
  func.func @transform_1(%arg0: i32) -> (i32, i32) {
    %c0_i32 = arith.constant 0 : i32
    %c0_i32_0 = arith.constant 0 : i32
    %c0_i32_1 = arith.constant 0 : i32
    return %c0_i32, %c0_i32_0 : i32, i32
  }
  func.func @transform_2(%arg0: i32) -> (i32, i32) {
    %c0_i32 = arith.constant 0 : i32
    %c0_i32_0 = arith.constant 0 : i32
    %c0_i32_1 = arith.constant 0 : i32
    return %c0_i32, %c0_i32_0 : i32, i32
  }
  func.func @transform_3(%arg0: i32) -> (i32, i32) {
    %c0_i32 = arith.constant 0 : i32
    %c0_i32_0 = arith.constant 0 : i32
    %c0_i32_1 = arith.constant 0 : i32
    return %c0_i32, %c0_i32_0 : i32, i32
  }
  func.func @transform_4(%arg0: i32) -> (i32, i32) {
    %c0_i32 = arith.constant 0 : i32
    %c0_i32_0 = arith.constant 0 : i32
    %c0_i32_1 = arith.constant 0 : i32
    return %c0_i32, %c0_i32_0 : i32, i32
  }
  func.func @transform_5(%arg0: i32) -> (i32, i32) {
    %c0_i32 = arith.constant 0 : i32
    %c0_i32_0 = arith.constant 0 : i32
    %c0_i32_1 = arith.constant 0 : i32
    return %c0_i32, %c0_i32_0 : i32, i32
  }
  func.func @transform_6(%arg0: i32) -> (i32, i32) {
    %c0_i32 = arith.constant 0 : i32
    %c0_i32_0 = arith.constant 0 : i32
    %c0_i32_1 = arith.constant 0 : i32
    return %c0_i32, %c0_i32_0 : i32, i32
  }
  func.func @transform_7(%arg0: i32) -> (i32, i32) {
    %c0_i32 = arith.constant 0 : i32
    %c0_i32_0 = arith.constant 0 : i32
    return %arg0, %c0_i32 : i32, i32
  }
}

</mosaic_0001>

<llo_original>
// kernel: tpu_custom_call.1
$region0: #{tpu_custom_call.1}
  #allocation0 [shape = 'u32[]', space=smem, size = 0x4, offset = 0x4, fixed_abs, tag = 'smem constant byte address 0x4 - core index']
  #allocation1 [shape = 'u32[144,128]{1,0:T(1,128)}', space=vmem, size = 0x12000, scoped, tag = 'internal scratch']
  %s0 = inlined_call_operand.vmem [shape: f32[1,128], index: 0, kind: input, shape index: {}]
  %s1 = inlined_call_operand.vmem [shape: f32[128,512], index: 1, kind: input, shape index: {}]
  %s2 = inlined_call_operand.vmem [shape: f32[1,512], index: 2, kind: input, shape index: {}]
  %s3 = inlined_call_operand.hbm [shape: f32[512,512], index: 3, kind: input, shape index: {}]
  %s4 = inlined_call_operand.vmem [shape: f32[1,512], index: 4, kind: input, shape index: {}]
  %s5 = inlined_call_operand.vmem [shape: f32[512,16], index: 5, kind: input, shape index: {}]
  %s6 = inlined_call_operand.vmem [shape: f32[1,16], index: 6, kind: input, shape index: {}]
  %s7 = inlined_call_operand.hbm [shape: f32[1,16], index: 7, kind: output, shape index: {}]
  %s8 = sld [smem:[#allocation0]]
  $region42: #{tpu_custom_call.1} parent=0
    _
  %s10 = ssub.s32 1, %s8
  %s11 = scalar_select 0, %s10, %s8
  $region1: #{tpu_custom_call.1} parent=0
    #allocation2 [shape = 'u8[1048576]{0}', space=vmem, size = 0x100000, scoped, tag = 'input window, operand 3, single buffered']
    #allocation3 [shape = 's32[1]{0}', space=sflag, size = 0x4, scoped, tag = 'scoped memory for tpu_custom_call.1']
    #allocation4 [shape = 's32[1]{0}', space=sflag, size = 0x4, scoped, tag = 'scoped memory for tpu_custom_call.1']
    #allocation5 [shape = 'u8[512]{0}', space=vmem, size = 0x400, scoped, tag = 'output window, operand 0, single buffered']
    %12 = vsyncpa [#allocation3], 0
    %13 = vsyncpa [#allocation4], 0
    // Predicated region
    $region2: #{tpu_custom_call.1} parent=1 // pred_check
      _
    $region3: #{tpu_custom_call.1} parent=1 // pred_check_branch
      %15 = sbr.rel (0) target = $region5
    $region4: #{tpu_custom_call.1} parent=1 // pred_region
      _
    $region5: #{tpu_custom_call.1} parent=1 // pred_fallthru
      _
    // Predicated region
    $region6: #{tpu_custom_call.1} parent=1 // pred_check
      _
    $region7: #{tpu_custom_call.1} parent=1 // pred_check_branch
      %17 = sbr.rel (0) target = $region9
    $region8: #{tpu_custom_call.1} parent=1 // pred_region
      _
    $region9: #{tpu_custom_call.1} parent=1 // pred_fallthru
      _
    // Predicated region
    $region10: #{tpu_custom_call.1} parent=1 // pred_check
      _
    $region11: #{tpu_custom_call.1} parent=1 // pred_check_branch
      %19 = sbr.rel (0) target = $region13
    $region12: #{tpu_custom_call.1} parent=1 // pred_region
      _
    $region13: #{tpu_custom_call.1} parent=1 // pred_fallthru
      _
    // Predicated region
    $region14: #{tpu_custom_call.1} parent=1 // pred_check
      _
    $region15: #{tpu_custom_call.1} parent=1 // pred_check_branch
      %21 = sbr.rel (0) target = $region17
    $region16: #{tpu_custom_call.1} parent=1 // pred_region
      %s23 = ssub.s32 32768, 32768
      %24 = vsyncadd [#allocation3], %s23
      %s25 = sshll.u32 [#allocation2], 4
      %s26 = int_to_ptr.vmem [resolvable:$true] %s25
      %31 = dma.hbm_to_vmem [thread:$0]  %s3, 32768, %s26, [#allocation3], 512, 512, 32
    $region17: #{tpu_custom_call.1} parent=1 // pred_fallthru
      _
    // Predicated region
    $region18: #{tpu_custom_call.1} parent=1 // pred_check
      _
    $region19: #{tpu_custom_call.1} parent=1 // pred_check_branch
      %33 = sbr.rel (0) target = $region21
    $region20: #{tpu_custom_call.1} parent=1 // pred_region
      _
    $region21: #{tpu_custom_call.1} parent=1 // pred_fallthru
      _
    // Predicated region
    $region22: #{tpu_custom_call.1} parent=1 // pred_check
      _
    $region23: #{tpu_custom_call.1} parent=1 // pred_check_branch
      %35 = sbr.rel (0) target = $region25
    $region24: #{tpu_custom_call.1} parent=1 // pred_region
      _
    $region25: #{tpu_custom_call.1} parent=1 // pred_fallthru
      _
    // Predicated region
    $region26: #{tpu_custom_call.1} parent=1 // pred_check
      _
    $region27: #{tpu_custom_call.1} parent=1 // pred_check_branch
      %37 = sbr.rel (0) target = $region29
    $region28: #{tpu_custom_call.1} parent=1 // pred_region
      _
    $region29: #{tpu_custom_call.1} parent=1 // pred_fallthru
      _
    // Predicated region
    $region30: #{tpu_custom_call.1} parent=1 // pred_check
      _
    $region31: #{tpu_custom_call.1} parent=1 // pred_check_branch
      %39 = sbr.rel (0) target = $region33
    $region32: #{tpu_custom_call.1} parent=1 // pred_region
      %40 = dma.done [#allocation3], 32768
    $region33: #{tpu_custom_call.1} parent=1 // pred_fallthru
      _
    %v41 = vld [vmem:[%s0] sm:$0x1]
    %v42 = vld [vmem:[%s1] sm:$0xff]
    %v43 = vld [vmem:[%s1 + $0x8] sm:$0xff]
    %v44 = vld [vmem:[%s1 + $0x10] sm:$0xff]
    %v45 = vld [vmem:[%s1 + $0x18] sm:$0xff]
    %v46 = vld [vmem:[%s1 + $0x20] sm:$0xff]
    %v47 = vld [vmem:[%s1 + $0x28] sm:$0xff]
    %v48 = vld [vmem:[%s1 + $0x30] sm:$0xff]
    %v49 = vld [vmem:[%s1 + $0x38] sm:$0xff]
    %v50 = vld [vmem:[%s1 + $0x40] sm:$0xff]
    %v51 = vld [vmem:[%s1 + $0x48] sm:$0xff]
    %v52 = vld [vmem:[%s1 + $0x50] sm:$0xff]
    %v53 = vld [vmem:[%s1 + $0x58] sm:$0xff]
    %v54 = vld [vmem:[%s1 + $0x60] sm:$0xff]
    %v55 = vld [vmem:[%s1 + $0x68] sm:$0xff]
    %v56 = vld [vmem:[%s1 + $0x70] sm:$0xff]
    %v57 = vld [vmem:[%s1 + $0x78] sm:$0xff]
    %v58 = vld [vmem:[%s1 + $0x80] sm:$0xff]
    %v59 = vld [vmem:[%s1 + $0x88] sm:$0xff]
    %v60 = vld [vmem:[%s1 + $0x90] sm:$0xff]
    %v61 = vld [vmem:[%s1 + $0x98] sm:$0xff]
    %v62 = vld [vmem:[%s1 + $0xa0] sm:$0xff]
    %v63 = vld [vmem:[%s1 + $0xa8] sm:$0xff]
    %v64 = vld [vmem:[%s1 + $0xb0] sm:$0xff]
    %v65 = vld [vmem:[%s1 + $0xb8] sm:$0xff]
    %v66 = vld [vmem:[%s1 + $0xc0] sm:$0xff]
    %v67 = vld [vmem:[%s1 + $0xc8] sm:$0xff]
    %v68 = vld [vmem:[%s1 + $0xd0] sm:$0xff]
    %v69 = vld [vmem:[%s1 + $0xd8] sm:$0xff]
    %v70 = vld [vmem:[%s1 + $0xe0] sm:$0xff]
    %v71 = vld [vmem:[%s1 + $0xe8] sm:$0xff]
    %v72 = vld [vmem:[%s1 + $0xf0] sm:$0xff]
    %v73 = vld [vmem:[%s1 + $0xf8] sm:$0xff]
    %v74 = vld [vmem:[%s1 + $0x100] sm:$0xff]
    %v75 = vld [vmem:[%s1 + $0x108] sm:$0xff]
    %v76 = vld [vmem:[%s1 + $0x110] sm:$0xff]
    %v77 = vld [vmem:[%s1 + $0x118] sm:$0xff]
    %v78 = vld [vmem:[%s1 + $0x120] sm:$0xff]
    %v79 = vld [vmem:[%s1 + $0x128] sm:$0xff]
    %v80 = vld [vmem:[%s1 + $0x130] sm:$0xff]
    %v81 = vld [vmem:[%s1 + $0x138] sm:$0xff]
    %v82 = vld [vmem:[%s1 + $0x140] sm:$0xff]
    %v83 = vld [vmem:[%s1 + $0x148] sm:$0xff]
    %v84 = vld [vmem:[%s1 + $0x150] sm:$0xff]
    %v85 = vld [vmem:[%s1 + $0x158] sm:$0xff]
    %v86 = vld [vmem:[%s1 + $0x160] sm:$0xff]
    %v87 = vld [vmem:[%s1 + $0x168] sm:$0xff]
    %v88 = vld [vmem:[%s1 + $0x170] sm:$0xff]
    %v89 = vld [vmem:[%s1 + $0x178] sm:$0xff]
    %v90 = vld [vmem:[%s1 + $0x180] sm:$0xff]
    %v91 = vld [vmem:[%s1 + $0x188] sm:$0xff]
    %v92 = vld [vmem:[%s1 + $0x190] sm:$0xff]
    %v93 = vld [vmem:[%s1 + $0x198] sm:$0xff]
    %v94 = vld [vmem:[%s1 + $0x1a0] sm:$0xff]
    %v95 = vld [vmem:[%s1 + $0x1a8] sm:$0xff]
    %v96 = vld [vmem:[%s1 + $0x1b0] sm:$0xff]
    %v97 = vld [vmem:[%s1 + $0x1b8] sm:$0xff]
    %v98 = vld [vmem:[%s1 + $0x1c0] sm:$0xff]
    %v99 = vld [vmem:[%s1 + $0x1c8] sm:$0xff]
    %v100 = vld [vmem:[%s1 + $0x1d0] sm:$0xff]
    %v101 = vld [vmem:[%s1 + $0x1d8] sm:$0xff]
    %v102 = vld [vmem:[%s1 + $0x1e0] sm:$0xff]
    %v103 = vld [vmem:[%s1 + $0x1e8] sm:$0xff]
    %v104 = vld [vmem:[%s1 + $0x1f0] sm:$0xff]
    %v105 = vld [vmem:[%s1 + $0x1f8] sm:$0xff]
    %v106 = vld [vmem:[%s2] sm:$0xf]
    %v108 = vlaneseq
    %v109 = vshrl.u32 %v108, 7
    %v110 = vsub.s32 0, %v109
    %v111 = vrot.slane %v106, %v110
    %v112 = vlaneseq
    %v113 = vshrl.u32 %v112, 7
    %v114 = vsub.s32 1, %v113
    %v115 = vrot.slane %v106, %v114
    %v116 = vlaneseq
    %v117 = vshrl.u32 %v116, 7
    %v118 = vsub.s32 2, %v117
    %v119 = vrot.slane %v106, %v118
    %v120 = vlaneseq
    %v121 = vshrl.u32 %v120, 7
    %v122 = vsub.s32 3, %v121
    %v123 = vrot.slane %v106, %v122
    %128 = vmatprep.subr.mxu0 %v103
    %129 = vmatpush1.msra.mxu0 %v102
    %130 = vmatprep.subr.mxu0 %v99
    %131 = vmatpush1.msra.mxu0 %v98
    %132 = vmatprep.subr.mxu0 %v95
    %133 = vmatpush1.msra.mxu0 %v94
    %134 = vmatprep.subr.mxu0 %v91
    %135 = vmatpush1.msra.mxu0 %v90
    %136 = vmatprep.subr.mxu0 %v87
    %137 = vmatpush1.msra.mxu0 %v86
    %138 = vmatprep.subr.mxu0 %v83
    %139 = vmatpush1.msra.mxu0 %v82
    %140 = vmatprep.subr.mxu0 %v79
    %141 = vmatpush1.msra.mxu0 %v78
    %142 = vmatprep.subr.mxu0 %v75
    %143 = vmatpush1.msra.mxu0 %v74
    %144 = vmatprep.subr.mxu0 %v71
    %145 = vmatpush1.msra.mxu0 %v70
    %146 = vmatprep.subr.mxu0 %v67
    %147 = vmatpush1.msra.mxu0 %v66
    %148 = vmatprep.subr.mxu0 %v63
    %149 = vmatpush1.msra.mxu0 %v62
    %150 = vmatprep.subr.mxu0 %v59
    %151 = vmatpush1.msra.mxu0 %v58
    %152 = vmatprep.subr.mxu0 %v55
    %153 = vmatpush1.msra.mxu0 %v54
    %154 = vmatprep.subr.mxu0 %v51
    %155 = vmatpush1.msra.mxu0 %v50
    %156 = vmatprep.subr.mxu0 %v47
    %157 = vmatpush1.msra.mxu0 %v46
    %158 = vmatprep.subr.mxu0 %v43
    %159 = vmatpush1.msra.mxu0 %v42
    %160 = vmatprep.subr.mxu0 0.0
    %161 = vmatpush2.msra.mxu0 0.0
    %162 = vmatprep.subr.mxu0 0.0
    %163 = vmatpush2.msra.mxu0 0.0
    %164 = vmatprep.subr.mxu0 0.0
    %165 = vmatpush2.msra.mxu0 0.0
    %166 = vmatprep.subr.mxu0 0.0
    %167 = vmatpush2.msra.mxu0 0.0
    %168 = vmatprep.subr.mxu0 0.0
    %169 = vmatpush2.msra.mxu0 0.0
    %170 = vmatprep.subr.mxu0 0.0
    %171 = vmatpush2.msra.mxu0 0.0
    %172 = vmatprep.subr.mxu0 0.0
    %173 = vmatpush2.msra.mxu0 0.0
    %174 = vmatprep.subr.mxu0 0.0
    %175 = vmatpush2.msra.mxu0 0.0
    %176 = vmatprep.subr.mxu0 0.0
    %177 = vmatpush2.msra.mxu0 0.0
    %178 = vmatprep.subr.mxu0 0.0
    %179 = vmatpush2.msra.mxu0 0.0
    %180 = vmatprep.subr.mxu0 0.0
    %181 = vmatpush2.msra.mxu0 0.0
    %182 = vmatprep.subr.mxu0 0.0
    %183 = vmatpush2.msra.mxu0 0.0
    %184 = vmatprep.subr.mxu0 0.0
    %185 = vmatpush2.msra.mxu0 0.0
    %186 = vmatprep.subr.mxu0 0.0
    %187 = vmatpush2.msra.mxu0 0.0
    %188 = vmatprep.subr.mxu0 0.0
    %189 = vmatpush2.msra.mxu0 0.0
    %190 = vmatprep.subr.mxu0 0.0
    %191 = vmatpush2.msra.mxu0 0.0
    %192 = vmatprep.mubr.f32.mxu0 0.0
    %193 = vmatmul.mubr.f32.gmra.mxu0 %v41
    %v194 = vpop.f32.mrf.mxu0
    %v195 = vadd.f32 %v111, %v194
    %v196 = vpop.f32.mrf.mxu0
    %v197 = vadd.f32 %v115, %v196
    %198 = vdwg.mxu0
    %199 = vmatprep.subr.mxu0 %v105
    %200 = vmatpush1.msra.mxu0 %v104
    %201 = vmatprep.subr.mxu0 %v101
    %202 = vmatpush1.msra.mxu0 %v100
    %203 = vmatprep.subr.mxu0 %v97
    %204 = vmatpush1.msra.mxu0 %v96
    %205 = vmatprep.subr.mxu0 %v93
    %206 = vmatpush1.msra.mxu0 %v92
    %207 = vmatprep.subr.mxu0 %v89
    %208 = vmatpush1.msra.mxu0 %v88
    %209 = vmatprep.subr.mxu0 %v85
    %210 = vmatpush1.msra.mxu0 %v84
    %211 = vmatprep.subr.mxu0 %v81
    %212 = vmatpush1.msra.mxu0 %v80
    %213 = vmatprep.subr.mxu0 %v77
    %214 = vmatpush1.msra.mxu0 %v76
    %215 = vmatprep.subr.mxu0 %v73
    %216 = vmatpush1.msra.mxu0 %v72
    %217 = vmatprep.subr.mxu0 %v69
    %218 = vmatpush1.msra.mxu0 %v68
    %219 = vmatprep.subr.mxu0 %v65
    %220 = vmatpush1.msra.mxu0 %v64
    %221 = vmatprep.subr.mxu0 %v61
    %222 = vmatpush1.msra.mxu0 %v60
    %223 = vmatprep.subr.mxu0 %v57
    %224 = vmatpush1.msra.mxu0 %v56
    %225 = vmatprep.subr.mxu0 %v53
    %226 = vmatpush1.msra.mxu0 %v52
    %227 = vmatprep.subr.mxu0 %v49
    %228 = vmatpush1.msra.mxu0 %v48
    %229 = vmatprep.subr.mxu0 %v45
    %230 = vmatpush1.msra.mxu0 %v44
    %231 = vmatprep.subr.mxu0 0.0
    %232 = vmatpush2.msra.mxu0 0.0
    %233 = vmatprep.subr.mxu0 0.0
    %234 = vmatpush2.msra.mxu0 0.0
    %235 = vmatprep.subr.mxu0 0.0
    %236 = vmatpush2.msra.mxu0 0.0
    %237 = vmatprep.subr.mxu0 0.0
    %238 = vmatpush2.msra.mxu0 0.0
    %239 = vmatprep.subr.mxu0 0.0
    %240 = vmatpush2.msra.mxu0 0.0
    %241 = vmatprep.subr.mxu0 0.0
    %242 = vmatpush2.msra.mxu0 0.0
    %243 = vmatprep.subr.mxu0 0.0
    %244 = vmatpush2.msra.mxu0 0.0
    %245 = vmatprep.subr.mxu0 0.0
    %246 = vmatpush2.msra.mxu0 0.0
    %247 = vmatprep.subr.mxu0 0.0
    %248 = vmatpush2.msra.mxu0 0.0
    %249 = vmatprep.subr.mxu0 0.0
    %250 = vmatpush2.msra.mxu0 0.0
    %251 = vmatprep.subr.mxu0 0.0
    %252 = vmatpush2.msra.mxu0 0.0
    %253 = vmatprep.subr.mxu0 0.0
    %254 = vmatpush2.msra.mxu0 0.0
    %255 = vmatprep.subr.mxu0 0.0
    %256 = vmatpush2.msra.mxu0 0.0
    %257 = vmatprep.subr.mxu0 0.0
    %258 = vmatpush2.msra.mxu0 0.0
    %259 = vmatprep.subr.mxu0 0.0
    %260 = vmatpush2.msra.mxu0 0.0
    %261 = vmatprep.subr.mxu0 0.0
    %262 = vmatpush2.msra.mxu0 0.0
    %263 = vmatprep.mubr.f32.mxu0 0.0
    %264 = vmatmul.mubr.f32.gmra.mxu0 %v41
    %v265 = vpop.f32.mrf.mxu0
    %v266 = vadd.f32 %v119, %v265
    %v267 = vpop.f32.mrf.mxu0
    %v268 = vadd.f32 %v123, %v267
    %269 = vdwg.mxu0
    %v270 = vmax.f32 %v195, 0.0
    %v271 = vmax.f32 %v197, 0.0
    %v272 = vmax.f32 %v266, 0.0
    %v273 = vmax.f32 %v268, 0.0
    %v274 = vld [vmem:[#allocation2] sm:$0xff]
    %v275 = vld [vmem:[#allocation2 + $0x8] sm:$0xff]
    %v276 = vld [vmem:[#allocation2 + $0x10] sm:$0xff]
    %v277 = vld [vmem:[#allocation2 + $0x18] sm:$0xff]
    %v278 = vld [vmem:[#allocation2 + $0x20] sm:$0xff]
    %v279 = vld [vmem:[#allocation2 + $0x28] sm:$0xff]
    %v280 = vld [vmem:[#allocation2 + $0x30] sm:$0xff]
    %v281 = vld [vmem:[#allocation2 + $0x38] sm:$0xff]
    %v282 = vld [vmem:[#allocation2 + $0x40] sm:$0xff]
    %v283 = vld [vmem:[#allocation2 + $0x48] sm:$0xff]
    %v284 = vld [vmem:[#allocation2 + $0x50] sm:$0xff]
    %v285 = vld [vmem:[#allocation2 + $0x58] sm:$0xff]
    %v286 = vld [vmem:[#allocation2 + $0x60] sm:$0xff]
    %v287 = vld [vmem:[#allocation2 + $0x68] sm:$0xff]
    %v288 = vld [vmem:[#allocation2 + $0x70] sm:$0xff]
    %v289 = vld [vmem:[#allocation2 + $0x78] sm:$0xff]
    %v290 = vld [vmem:[#allocation2 + $0x80] sm:$0xff]
    %v291 = vld [vmem:[#allocation2 + $0x88] sm:$0xff]
    %v292 = vld [vmem:[#allocation2 + $0x90] sm:$0xff]
    %v293 = vld [vmem:[#allocation2 + $0x98] sm:$0xff]
    %v294 = vld [vmem:[#allocation2 + $0xa0] sm:$0xff]
    %v295 = vld [vmem:[#allocation2 + $0xa8] sm:$0xff]
    %v296 = vld [vmem:[#allocation2 + $0xb0] sm:$0xff]
    %v297 = vld [vmem:[#allocation2 + $0xb8] sm:$0xff]
    %v298 = vld [vmem:[#allocation2 + $0xc0] sm:$0xff]
    %v299 = vld [vmem:[#allocation2 + $0xc8] sm:$0xff]
    %v300 = vld [vmem:[#allocation2 + $0xd0] sm:$0xff]
    %v301 = vld [vmem:[#allocation2 + $0xd8] sm:$0xff]
    %v302 = vld [vmem:[#allocation2 + $0xe0] sm:$0xff]
    %v303 = vld [vmem:[#allocation2 + $0xe8] sm:$0xff]
    %v304 = vld [vmem:[#allocation2 + $0xf0] sm:$0xff]
    %v305 = vld [vmem:[#allocation2 + $0xf8] sm:$0xff]
    %v306 = vld [vmem:[#allocation2 + $0x100] sm:$0xff]
    %v307 = vld [vmem:[#allocation2 + $0x108] sm:$0xff]
    %v308 = vld [vmem:[#allocation2 + $0x110] sm:$0xff]
    %v309 = vld [vmem:[#allocation2 + $0x118] sm:$0xff]
    %v310 = vld [vmem:[#allocation2 + $0x120] sm:$0xff]
    %v311 = vld [vmem:[#allocation2 + $0x128] sm:$0xff]
    %v312 = vld [vmem:[#allocation2 + $0x130] sm:$0xff]
    %v313 = vld [vmem:[#allocation2 + $0x138] sm:$0xff]
    %v314 = vld [vmem:[#allocation2 + $0x140] sm:$0xff]
    %v315 = vld [vmem:[#allocation2 + $0x148] sm:$0xff]
    %v316 = vld [vmem:[#allocation2 + $0x150] sm:$0xff]
    %v317 = vld [vmem:[#allocation2 + $0x158] sm:$0xff]
    %v318 = vld [vmem:[#allocation2 + $0x160] sm:$0xff]
    %v319 = vld [vmem:[#allocation2 + $0x168] sm:$0xff]
    %v320 = vld [vmem:[#allocation2 + $0x170] sm:$0xff]
    %v321 = vld [vmem:[#allocation2 + $0x178] sm:$0xff]
    %v322 = vld [vmem:[#allocation2 + $0x180] sm:$0xff]
    %v323 = vld [vmem:[#allocation2 + $0x188] sm:$0xff]
    %v324 = vld [vmem:[#allocation2 + $0x190] sm:$0xff]
    %v325 = vld [vmem:[#allocation2 + $0x198] sm:$0xff]
    %v326 = vld [vmem:[#allocation2 + $0x1a0] sm:$0xff]
    %v327 = vld [vmem:[#allocation2 + $0x1a8] sm:$0xff]
    %v328 = vld [vmem:[#allocation2 + $0x1b0] sm:$0xff]
    %v329 = vld [vmem:[#allocation2 + $0x1b8] sm:$0xff]
    %v330 = vld [vmem:[#allocation2 + $0x1c0] sm:$0xff]
    %v331 = vld [vmem:[#allocation2 + $0x1c8] sm:$0xff]
    %v332 = vld [vmem:[#allocation2 + $0x1d0] sm:$0xff]
    %v333 = vld [vmem:[#allocation2 + $0x1d8] sm:$0xff]
    %v334 = vld [vmem:[#allocation2 + $0x1e0] sm:$0xff]
    %v335 = vld [vmem:[#allocation2 + $0x1e8] sm:$0xff]
    %v336 = vld [vmem:[#allocation2 + $0x1f0] sm:$0xff]
    %v337 = vld [vmem:[#allocation2 + $0x1f8] sm:$0xff]
    %v338 = vld [vmem:[#allocation2 + $0x200] sm:$0xff]
    %v339 = vld [vmem:[#allocation2 + $0x208] sm:$0xff]
    %v340 = vld [vmem:[#allocation2 + $0x210] sm:$0xff]
    %v341 = vld [vmem:[#allocation2 + $0x218] sm:$0xff]
    %v342 = vld [vmem:[#allocation2 + $0x220] sm:$0xff]
    %v343 = vld [vmem:[#allocation2 + $0x228] sm:$0xff]
    %v344 = vld [vmem:[#allocation2 + $0x230] sm:$0xff]
    %v345 = vld [vmem:[#allocation2 + $0x238] sm:$0xff]
    %v346 = vld [vmem:[#allocation2 + $0x240] sm:$0xff]
    %v347 = vld [vmem:[#allocation2 + $0x248] sm:$0xff]
    %v348 = vld [vmem:[#allocation2 + $0x250] sm:$0xff]
    %v349 = vld [vmem:[#allocation2 + $0x258] sm:$0xff]
    %v350 = vld [vmem:[#allocation2 + $0x260] sm:$0xff]
    %v351 = vld [vmem:[#allocation2 + $0x268] sm:$0xff]
    %v352 = vld [vmem:[#allocation2 + $0x270] sm:$0xff]
    %v353 = vld [vmem:[#allocation2 + $0x278] sm:$0xff]
    %v354 = vld [vmem:[#allocation2 + $0x280] sm:$0xff]
    %v355 = vld [vmem:[#allocation2 + $0x288] sm:$0xff]
    %v356 = vld [vmem:[#allocation2 + $0x290] sm:$0xff]
    %v357 = vld [vmem:[#allocation2 + $0x298] sm:$0xff]
    %v358 = vld [vmem:[#allocation2 + $0x2a0] sm:$0xff]
    %v359 = vld [vmem:[#allocation2 + $0x2a8] sm:$0xff]
    %v360 = vld [vmem:[#allocation2 + $0x2b0] sm:$0xff]
    %v361 = vld [vmem:[#allocation2 + $0x2b8] sm:$0xff]
    %v362 = vld [vmem:[#allocation2 + $0x2c0] sm:$0xff]
    %v363 = vld [vmem:[#allocation2 + $0x2c8] sm:$0xff]
    %v364 = vld [vmem:[#allocation2 + $0x2d0] sm:$0xff]
    %v365 = vld [vmem:[#allocation2 + $0x2d8] sm:$0xff]
    %v366 = vld [vmem:[#allocation2 + $0x2e0] sm:$0xff]
    %v367 = vld [vmem:[#allocation2 + $0x2e8] sm:$0xff]
    %v368 = vld [vmem:[#allocation2 + $0x2f0] sm:$0xff]
    %v369 = vld [vmem:[#allocation2 + $0x2f8] sm:$0xff]
    %v370 = vld [vmem:[#allocation2 + $0x300] sm:$0xff]
    %v371 = vld [vmem:[#allocation2 + $0x308] sm:$0xff]
    %v372 = vld [vmem:[#allocation2 + $0x310] sm:$0xff]
    %v373 = vld [vmem:[#allocation2 + $0x318] sm:$0xff]
    %v374 = vld [vmem:[#allocation2 + $0x320] sm:$0xff]
    %v375 = vld [vmem:[#allocation2 + $0x328] sm:$0xff]
    %v376 = vld [vmem:[#allocation2 + $0x330] sm:$0xff]
    %v377 = vld [vmem:[#allocation2 + $0x338] sm:$0xff]
    %v378 = vld [vmem:[#allocation2 + $0x340] sm:$0xff]
    %v379 = vld [vmem:[#allocation2 + $0x348] sm:$0xff]
    %v380 = vld [vmem:[#allocation2 + $0x350] sm:$0xff]
    %v381 = vld [vmem:[#allocation2 + $0x358] sm:$0xff]
    %v382 = vld [vmem:[#allocation2 + $0x360] sm:$0xff]
    %v383 = vld [vmem:[#allocation2 + $0x368] sm:$0xff]
    %v384 = vld [vmem:[#allocation2 + $0x370] sm:$0xff]
    %v385 = vld [vmem:[#allocation2 + $0x378] sm:$0xff]
    %v386 = vld [vmem:[#allocation2 + $0x380] sm:$0xff]
    %v387 = vld [vmem:[#allocation2 + $0x388] sm:$0xff]
    %v388 = vld [vmem:[#allocation2 + $0x390] sm:$0xff]
    %v389 = vld [vmem:[#allocation2 + $0x398] sm:$0xff]
    %v390 = vld [vmem:[#allocation2 + $0x3a0] sm:$0xff]
    %v391 = vld [vmem:[#allocation2 + $0x3a8] sm:$0xff]
    %v392 = vld [vmem:[#allocation2 + $0x3b0] sm:$0xff]
    %v393 = vld [vmem:[#allocation2 + $0x3b8] sm:$0xff]
    %v394 = vld [vmem:[#allocation2 + $0x3c0] sm:$0xff]
    %v395 = vld [vmem:[#allocation2 + $0x3c8] sm:$0xff]
    %v396 = vld [vmem:[#allocation2 + $0x3d0] sm:$0xff]
    %v397 = vld [vmem:[#allocation2 + $0x3d8] sm:$0xff]
    %v398 = vld [vmem:[#allocation2 + $0x3e0] sm:$0xff]
    %v399 = vld [vmem:[#allocation2 + $0x3e8] sm:$0xff]
    %v400 = vld [vmem:[#allocation2 + $0x3f0] sm:$0xff]
    %v401 = vld [vmem:[#allocation2 + $0x3f8] sm:$0xff]
    %v402 = vld [vmem:[#allocation2 + $0x400] sm:$0xff]
    %v403 = vld [vmem:[#allocation2 + $0x408] sm:$0xff]
    %v404 = vld [vmem:[#allocation2 + $0x410] sm:$0xff]
    %v405 = vld [vmem:[#allocation2 + $0x418] sm:$0xff]
    %v406 = vld [vmem:[#allocation2 + $0x420] sm:$0xff]
    %v407 = vld [vmem:[#allocation2 + $0x428] sm:$0xff]
    %v408 = vld [vmem:[#allocation2 + $0x430] sm:$0xff]
    %v409 = vld [vmem:[#allocation2 + $0x438] sm:$0xff]
    %v410 = vld [vmem:[#allocation2 + $0x440] sm:$0xff]
    %v411 = vld [vmem:[#allocation2 + $0x448] sm:$0xff]
    %v412 = vld [vmem:[#allocation2 + $0x450] sm:$0xff]
    %v413 = vld [vmem:[#allocation2 + $0x458] sm:$0xff]
    %v414 = vld [vmem:[#allocation2 + $0x460] sm:$0xff]
    %v415 = vld [vmem:[#allocation2 + $0x468] sm:$0xff]
    %v416 = vld [vmem:[#allocation2 + $0x470] sm:$0xff]
    %v417 = vld [vmem:[#allocation2 + $0x478] sm:$0xff]
    %v418 = vld [vmem:[#allocation2 + $0x480] sm:$0xff]
    %v419 = vld [vmem:[#allocation2 + $0x488] sm:$0xff]
    %v420 = vld [vmem:[#allocation2 + $0x490] sm:$0xff]
    %v421 = vld [vmem:[#allocation2 + $0x498] sm:$0xff]
    %v422 = vld [vmem:[#allocation2 + $0x4a0] sm:$0xff]
    %v423 = vld [vmem:[#allocation2 + $0x4a8] sm:$0xff]
    %v424 = vld [vmem:[#allocation2 + $0x4b0] sm:$0xff]
    %v425 = vld [vmem:[#allocation2 + $0x4b8] sm:$0xff]
    %v426 = vld [vmem:[#allocation2 + $0x4c0] sm:$0xff]
    %v427 = vld [vmem:[#allocation2 + $0x4c8] sm:$0xff]
    %v428 = vld [vmem:[#allocation2 + $0x4d0] sm:$0xff]
    %v429 = vld [vmem:[#allocation2 + $0x4d8] sm:$0xff]
    %v430 = vld [vmem:[#allocation2 + $0x4e0] sm:$0xff]
    %v431 = vld [vmem:[#allocation2 + $0x4e8] sm:$0xff]
    %v432 = vld [vmem:[#allocation2 + $0x4f0] sm:$0xff]
    %v433 = vld [vmem:[#allocation2 + $0x4f8] sm:$0xff]
    %v434 = vld [vmem:[#allocation2 + $0x500] sm:$0xff]
    %v435 = vld [vmem:[#allocation2 + $0x508] sm:$0xff]
    %v436 = vld [vmem:[#allocation2 + $0x510] sm:$0xff]
    %v437 = vld [vmem:[#allocation2 + $0x518] sm:$0xff]
    %v438 = vld [vmem:[#allocation2 + $0x520] sm:$0xff]
    %v439 = vld [vmem:[#allocation2 + $0x528] sm:$0xff]
    %v440 = vld [vmem:[#allocation2 + $0x530] sm:$0xff]
    %v441 = vld [vmem:[#allocation2 + $0x538] sm:$0xff]
    %v442 = vld [vmem:[#allocation2 + $0x540] sm:$0xff]
    %v443 = vld [vmem:[#allocation2 + $0x548] sm:$0xff]
    %v444 = vld [vmem:[#allocation2 + $0x550] sm:$0xff]
    %v445 = vld [vmem:[#allocation2 + $0x558] sm:$0xff]
    %v446 = vld [vmem:[#allocation2 + $0x560] sm:$0xff]
    %v447 = vld [vmem:[#allocation2 + $0x568] sm:$0xff]
    %v448 = vld [vmem:[#allocation2 + $0x570] sm:$0xff]
    %v449 = vld [vmem:[#allocation2 + $0x578] sm:$0xff]
    %v450 = vld [vmem:[#allocation2 + $0x580] sm:$0xff]
    %v451 = vld [vmem:[#allocation2 + $0x588] sm:$0xff]
    %v452 = vld [vmem:[#allocation2 + $0x590] sm:$0xff]
    %v453 = vld [vmem:[#allocation2 + $0x598] sm:$0xff]
    %v454 = vld [vmem:[#allocation2 + $0x5a0] sm:$0xff]
    %v455 = vld [vmem:[#allocation2 + $0x5a8] sm:$0xff]
    %v456 = vld [vmem:[#allocation2 + $0x5b0] sm:$0xff]
    %v457 = vld [vmem:[#allocation2 + $0x5b8] sm:$0xff]
    %v458 = vld [vmem:[#allocation2 + $0x5c0] sm:$0xff]
    %v459 = vld [vmem:[#allocation2 + $0x5c8] sm:$0xff]
    %v460 = vld [vmem:[#allocation2 + $0x5d0] sm:$0xff]
    %v461 = vld [vmem:[#allocation2 + $0x5d8] sm:$0xff]
    %v462 = vld [vmem:[#allocation2 + $0x5e0] sm:$0xff]
    %v463 = vld [vmem:[#allocation2 + $0x5e8] sm:$0xff]
    %v464 = vld [vmem:[#allocation2 + $0x5f0] sm:$0xff]
    %v465 = vld [vmem:[#allocation2 + $0x5f8] sm:$0xff]
    %v466 = vld [vmem:[#allocation2 + $0x600] sm:$0xff]
    %v467 = vld [vmem:[#allocation2 + $0x608] sm:$0xff]
    %v468 = vld [vmem:[#allocation2 + $0x610] sm:$0xff]
    %v469 = vld [vmem:[#allocation2 + $0x618] sm:$0xff]
    %v470 = vld [vmem:[#allocation2 + $0x620] sm:$0xff]
    %v471 = vld [vmem:[#allocation2 + $0x628] sm:$0xff]
    %v472 = vld [vmem:[#allocation2 + $0x630] sm:$0xff]
    %v473 = vld [vmem:[#allocation2 + $0x638] sm:$0xff]
    %v474 = vld [vmem:[#allocation2 + $0x640] sm:$0xff]
    %v475 = vld [vmem:[#allocation2 + $0x648] sm:$0xff]
    %v476 = vld [vmem:[#allocation2 + $0x650] sm:$0xff]
    %v477 = vld [vmem:[#allocation2 + $0x658] sm:$0xff]
    %v478 = vld [vmem:[#allocation2 + $0x660] sm:$0xff]
    %v479 = vld [vmem:[#allocation2 + $0x668] sm:$0xff]
    %v480 = vld [vmem:[#allocation2 + $0x670] sm:$0xff]
    %v481 = vld [vmem:[#allocation2 + $0x678] sm:$0xff]
    %v482 = vld [vmem:[#allocation2 + $0x680] sm:$0xff]
    %v483 = vld [vmem:[#allocation2 + $0x688] sm:$0xff]
    %v484 = vld [vmem:[#allocation2 + $0x690] sm:$0xff]
    %v485 = vld [vmem:[#allocation2 + $0x698] sm:$0xff]
    %v486 = vld [vmem:[#allocation2 + $0x6a0] sm:$0xff]
    %v487 = vld [vmem:[#allocation2 + $0x6a8] sm:$0xff]
    %v488 = vld [vmem:[#allocation2 + $0x6b0] sm:$0xff]
    %v489 = vld [vmem:[#allocation2 + $0x6b8] sm:$0xff]
    %v490 = vld [vmem:[#allocation2 + $0x6c0] sm:$0xff]
    %v491 = vld [vmem:[#allocation2 + $0x6c8] sm:$0xff]
    %v492 = vld [vmem:[#allocation2 + $0x6d0] sm:$0xff]
    %v493 = vld [vmem:[#allocation2 + $0x6d8] sm:$0xff]
    %v494 = vld [vmem:[#allocation2 + $0x6e0] sm:$0xff]
    %v495 = vld [vmem:[#allocation2 + $0x6e8] sm:$0xff]
    %v496 = vld [vmem:[#allocation2 + $0x6f0] sm:$0xff]
    %v497 = vld [vmem:[#allocation2 + $0x6f8] sm:$0xff]
    %v498 = vld [vmem:[#allocation2 + $0x700] sm:$0xff]
    %v499 = vld [vmem:[#allocation2 + $0x708] sm:$0xff]
    %v500 = vld [vmem:[#allocation2 + $0x710] sm:$0xff]
    %v501 = vld [vmem:[#allocation2 + $0x718] sm:$0xff]
    %v502 = vld [vmem:[#allocation2 + $0x720] sm:$0xff]
    %v503 = vld [vmem:[#allocation2 + $0x728] sm:$0xff]
    %v504 = vld [vmem:[#allocation2 + $0x730] sm:$0xff]
    %v505 = vld [vmem:[#allocation2 + $0x738] sm:$0xff]
    %v506 = vld [vmem:[#allocation2 + $0x740] sm:$0xff]
    %v507 = vld [vmem:[#allocation2 + $0x748] sm:$0xff]
    %v508 = vld [vmem:[#allocation2 + $0x750] sm:$0xff]
    %v509 = vld [vmem:[#allocation2 + $0x758] sm:$0xff]
    %v510 = vld [vmem:[#allocation2 + $0x760] sm:$0xff]
    %v511 = vld [vmem:[#allocation2 + $0x768] sm:$0xff]
    %v512 = vld [vmem:[#allocation2 + $0x770] sm:$0xff]
    %v513 = vld [vmem:[#allocation2 + $0x778] sm:$0xff]
    %v514 = vld [vmem:[#allocation2 + $0x780] sm:$0xff]
    %v515 = vld [vmem:[#allocation2 + $0x788] sm:$0xff]
    %v516 = vld [vmem:[#allocation2 + $0x790] sm:$0xff]
    %v517 = vld [vmem:[#allocation2 + $0x798] sm:$0xff]
    %v518 = vld [vmem:[#allocation2 + $0x7a0] sm:$0xff]
    %v519 = vld [vmem:[#allocation2 + $0x7a8] sm:$0xff]
    %v520 = vld [vmem:[#allocation2 + $0x7b0] sm:$0xff]
    %v521 = vld [vmem:[#allocation2 + $0x7b8] sm:$0xff]
    %v522 = vld [vmem:[#allocation2 + $0x7c0] sm:$0xff]
    %v523 = vld [vmem:[#allocation2 + $0x7c8] sm:$0xff]
    %v524 = vld [vmem:[#allocation2 + $0x7d0] sm:$0xff]
    %v525 = vld [vmem:[#allocation2 + $0x7d8] sm:$0xff]
    %v526 = vld [vmem:[#allocation2 + $0x7e0] sm:$0xff]
    %v527 = vld [vmem:[#allocation2 + $0x7e8] sm:$0xff]
    %v528 = vld [vmem:[#allocation2 + $0x7f0] sm:$0xff]
    %v529 = vld [vmem:[#allocation2 + $0x7f8] sm:$0xff]
    %v530 = vld [vmem:[%s4] sm:$0xf]
    %v532 = vlaneseq
    %v533 = vshrl.u32 %v532, 7
    %v534 = vsub.s32 0, %v533
    %v535 = vrot.slane %v530, %v534
    %v536 = vlaneseq
    %v537 = vshrl.u32 %v536, 7
    %v538 = vsub.s32 1, %v537
    %v539 = vrot.slane %v530, %v538
    %v540 = vlaneseq
    %v541 = vshrl.u32 %v540, 7
    %v542 = vsub.s32 2, %v541
    %v543 = vrot.slane %v530, %v542
    %v544 = vlaneseq
    %v545 = vshrl.u32 %v544, 7
    %v546 = vsub.s32 3, %v545
    %v547 = vrot.slane %v530, %v546
    %552 = vmatprep.subr.mxu0 %v335
    %553 = vmatpush1.msra.mxu0 %v334
    %554 = vmatprep.subr.mxu0 %v331
    %555 = vmatpush1.msra.mxu0 %v330
    %556 = vmatprep.subr.mxu0 %v327
    %557 = vmatpush1.msra.mxu0 %v326
    %558 = vmatprep.subr.mxu0 %v323
    %559 = vmatpush1.msra.mxu0 %v322
    %560 = vmatprep.subr.mxu0 %v319
    %561 = vmatpush1.msra.mxu0 %v318
    %562 = vmatprep.subr.mxu0 %v315
    %563 = vmatpush1.msra.mxu0 %v314
    %564 = vmatprep.subr.mxu0 %v311
    %565 = vmatpush1.msra.mxu0 %v310
    %566 = vmatprep.subr.mxu0 %v307
    %567 = vmatpush1.msra.mxu0 %v306
    %568 = vmatprep.subr.mxu0 %v303
    %569 = vmatpush1.msra.mxu0 %v302
    %570 = vmatprep.subr.mxu0 %v299
    %571 = vmatpush1.msra.mxu0 %v298
    %572 = vmatprep.subr.mxu0 %v295
    %573 = vmatpush1.msra.mxu0 %v294
    %574 = vmatprep.subr.mxu0 %v291
    %575 = vmatpush1.msra.mxu0 %v290
    %576 = vmatprep.subr.mxu0 %v287
    %577 = vmatpush1.msra.mxu0 %v286
    %578 = vmatprep.subr.mxu0 %v283
    %579 = vmatpush1.msra.mxu0 %v282
    %580 = vmatprep.subr.mxu0 %v279
    %581 = vmatpush1.msra.mxu0 %v278
    %582 = vmatprep.subr.mxu0 %v275
    %583 = vmatpush1.msra.mxu0 %v274
    %584 = vmatprep.subr.mxu0 %v399
    %585 = vmatpush2.msra.mxu0 %v398
    %586 = vmatprep.subr.mxu0 %v395
    %587 = vmatpush2.msra.mxu0 %v394
    %588 = vmatprep.subr.mxu0 %v391
    %589 = vmatpush2.msra.mxu0 %v390
    %590 = vmatprep.subr.mxu0 %v387
    %591 = vmatpush2.msra.mxu0 %v386
    %592 = vmatprep.subr.mxu0 %v383
    %593 = vmatpush2.msra.mxu0 %v382
    %594 = vmatprep.subr.mxu0 %v379
    %595 = vmatpush2.msra.mxu0 %v378
    %596 = vmatprep.subr.mxu0 %v375
    %597 = vmatpush2.msra.mxu0 %v374
    %598 = vmatprep.subr.mxu0 %v371
    %599 = vmatpush2.msra.mxu0 %v370
    %600 = vmatprep.subr.mxu0 %v367
    %601 = vmatpush2.msra.mxu0 %v366
    %602 = vmatprep.subr.mxu0 %v363
    %603 = vmatpush2.msra.mxu0 %v362
    %604 = vmatprep.subr.mxu0 %v359
    %605 = vmatpush2.msra.mxu0 %v358
    %606 = vmatprep.subr.mxu0 %v355
    %607 = vmatpush2.msra.mxu0 %v354
    %608 = vmatprep.subr.mxu0 %v351
    %609 = vmatpush2.msra.mxu0 %v350
    %610 = vmatprep.subr.mxu0 %v347
    %611 = vmatpush2.msra.mxu0 %v346
    %612 = vmatprep.subr.mxu0 %v343
    %613 = vmatpush2.msra.mxu0 %v342
    %614 = vmatprep.subr.mxu0 %v339
    %615 = vmatpush2.msra.mxu0 %v338
    %616 = vmatprep.mubr.f32.mxu0 %v271
    %617 = vmatmul.mubr.f32.gmra.mxu0 %v270
    %v618 = vpop.f32.mrf.mxu0
    %v619 = vadd.f32 %v535, %v618
    %v620 = vpop.f32.mrf.mxu0
    %v621 = vadd.f32 %v539, %v620
    %622 = vdwg.mxu0
    %623 = vmatprep.subr.mxu0 %v463
    %624 = vmatpush1.msra.mxu0 %v462
    %625 = vmatprep.subr.mxu0 %v459
    %626 = vmatpush1.msra.mxu0 %v458
    %627 = vmatprep.subr.mxu0 %v455
    %628 = vmatpush1.msra.mxu0 %v454
    %629 = vmatprep.subr.mxu0 %v451
    %630 = vmatpush1.msra.mxu0 %v450
    %631 = vmatprep.subr.mxu0 %v447
    %632 = vmatpush1.msra.mxu0 %v446
    %633 = vmatprep.subr.mxu0 %v443
    %634 = vmatpush1.msra.mxu0 %v442
    %635 = vmatprep.subr.mxu0 %v439
    %636 = vmatpush1.msra.mxu0 %v438
    %637 = vmatprep.subr.mxu0 %v435
    %638 = vmatpush1.msra.mxu0 %v434
    %639 = vmatprep.subr.mxu0 %v431
    %640 = vmatpush1.msra.mxu0 %v430
    %641 = vmatprep.subr.mxu0 %v427
    %642 = vmatpush1.msra.mxu0 %v426
    %643 = vmatprep.subr.mxu0 %v423
    %644 = vmatpush1.msra.mxu0 %v422
    %645 = vmatprep.subr.mxu0 %v419
    %646 = vmatpush1.msra.mxu0 %v418
    %647 = vmatprep.subr.mxu0 %v415
    %648 = vmatpush1.msra.mxu0 %v414
    %649 = vmatprep.subr.mxu0 %v411
    %650 = vmatpush1.msra.mxu0 %v410
    %651 = vmatprep.subr.mxu0 %v407
    %652 = vmatpush1.msra.mxu0 %v406
    %653 = vmatprep.subr.mxu0 %v403
    %654 = vmatpush1.msra.mxu0 %v402
    %655 = vmatprep.subr.mxu0 %v527
    %656 = vmatpush2.msra.mxu0 %v526
    %657 = vmatprep.subr.mxu0 %v523
    %658 = vmatpush2.msra.mxu0 %v522
    %659 = vmatprep.subr.mxu0 %v519
    %660 = vmatpush2.msra.mxu0 %v518
    %661 = vmatprep.subr.mxu0 %v515
    %662 = vmatpush2.msra.mxu0 %v514
    %663 = vmatprep.subr.mxu0 %v511
    %664 = vmatpush2.msra.mxu0 %v510
    %665 = vmatprep.subr.mxu0 %v507
    %666 = vmatpush2.msra.mxu0 %v506
    %667 = vmatprep.subr.mxu0 %v503
    %668 = vmatpush2.msra.mxu0 %v502
    %669 = vmatprep.subr.mxu0 %v499
    %670 = vmatpush2.msra.mxu0 %v498
    %671 = vmatprep.subr.mxu0 %v495
    %672 = vmatpush2.msra.mxu0 %v494
    %673 = vmatprep.subr.mxu0 %v491
    %674 = vmatpush2.msra.mxu0 %v490
    %675 = vmatprep.subr.mxu0 %v487
    %676 = vmatpush2.msra.mxu0 %v486
    %677 = vmatprep.subr.mxu0 %v483
    %678 = vmatpush2.msra.mxu0 %v482
    %679 = vmatprep.subr.mxu0 %v479
    %680 = vmatpush2.msra.mxu0 %v478
    %681 = vmatprep.subr.mxu0 %v475
    %682 = vmatpush2.msra.mxu0 %v474
    %683 = vmatprep.subr.mxu0 %v471
    %684 = vmatpush2.msra.mxu0 %v470
    %685 = vmatprep.subr.mxu0 %v467
    %686 = vmatpush2.msra.mxu0 %v466
    %687 = vmatprep.mubr.f32.mxu0 %v273
    %688 = vmatmul.mubr.f32.gmra.mxu0 %v272
    %v689 = vpop.f32.mrf.mxu0
    %v690 = vadd.f32 %v619, %v689
    %v691 = vpop.f32.mrf.mxu0
    %v692 = vadd.f32 %v621, %v691
    %693 = vdwg.mxu0
    %694 = vmatprep.subr.mxu0 %v337
    %695 = vmatpush1.msra.mxu0 %v336
    %696 = vmatprep.subr.mxu0 %v333
    %697 = vmatpush1.msra.mxu0 %v332
    %698 = vmatprep.subr.mxu0 %v329
    %699 = vmatpush1.msra.mxu0 %v328
    %700 = vmatprep.subr.mxu0 %v325
    %701 = vmatpush1.msra.mxu0 %v324
    %702 = vmatprep.subr.mxu0 %v321
    %703 = vmatpush1.msra.mxu0 %v320
    %704 = vmatprep.subr.mxu0 %v317
    %705 = vmatpush1.msra.mxu0 %v316
    %706 = vmatprep.subr.mxu0 %v313
    %707 = vmatpush1.msra.mxu0 %v312
    %708 = vmatprep.subr.mxu0 %v309
    %709 = vmatpush1.msra.mxu0 %v308
    %710 = vmatprep.subr.mxu0 %v305
    %711 = vmatpush1.msra.mxu0 %v304
    %712 = vmatprep.subr.mxu0 %v301
    %713 = vmatpush1.msra.mxu0 %v300
    %714 = vmatprep.subr.mxu0 %v297
    %715 = vmatpush1.msra.mxu0 %v296
    %716 = vmatprep.subr.mxu0 %v293
    %717 = vmatpush1.msra.mxu0 %v292
    %718 = vmatprep.subr.mxu0 %v289
    %719 = vmatpush1.msra.mxu0 %v288
    %720 = vmatprep.subr.mxu0 %v285
    %721 = vmatpush1.msra.mxu0 %v284
    %722 = vmatprep.subr.mxu0 %v281
    %723 = vmatpush1.msra.mxu0 %v280
    %724 = vmatprep.subr.mxu0 %v277
    %725 = vmatpush1.msra.mxu0 %v276
    %726 = vmatprep.subr.mxu0 %v401
    %727 = vmatpush2.msra.mxu0 %v400
    %728 = vmatprep.subr.mxu0 %v397
    %729 = vmatpush2.msra.mxu0 %v396
    %730 = vmatprep.subr.mxu0 %v393
    %731 = vmatpush2.msra.mxu0 %v392
    %732 = vmatprep.subr.mxu0 %v389
    %733 = vmatpush2.msra.mxu0 %v388
    %734 = vmatprep.subr.mxu0 %v385
    %735 = vmatpush2.msra.mxu0 %v384
    %736 = vmatprep.subr.mxu0 %v381
    %737 = vmatpush2.msra.mxu0 %v380
    %738 = vmatprep.subr.mxu0 %v377
    %739 = vmatpush2.msra.mxu0 %v376
    %740 = vmatprep.subr.mxu0 %v373
    %741 = vmatpush2.msra.mxu0 %v372
    %742 = vmatprep.subr.mxu0 %v369
    %743 = vmatpush2.msra.mxu0 %v368
    %744 = vmatprep.subr.mxu0 %v365
    %745 = vmatpush2.msra.mxu0 %v364
    %746 = vmatprep.subr.mxu0 %v361
    %747 = vmatpush2.msra.mxu0 %v360
    %748 = vmatprep.subr.mxu0 %v357
    %749 = vmatpush2.msra.mxu0 %v356
    %750 = vmatprep.subr.mxu0 %v353
    %751 = vmatpush2.msra.mxu0 %v352
    %752 = vmatprep.subr.mxu0 %v349
    %753 = vmatpush2.msra.mxu0 %v348
    %754 = vmatprep.subr.mxu0 %v345
    %755 = vmatpush2.msra.mxu0 %v344
    %756 = vmatprep.subr.mxu0 %v341
    %757 = vmatpush2.msra.mxu0 %v340
    %758 = vmatprep.mubr.f32.mxu0 %v271
    %759 = vmatmul.mubr.f32.gmra.mxu0 %v270
    %v760 = vpop.f32.mrf.mxu0
    %v761 = vadd.f32 %v543, %v760
    %v762 = vpop.f32.mrf.mxu0
    %v763 = vadd.f32 %v547, %v762
    %764 = vdwg.mxu0
    %765 = vmatprep.subr.mxu0 %v465
    %766 = vmatpush1.msra.mxu0 %v464
    %767 = vmatprep.subr.mxu0 %v461
    %768 = vmatpush1.msra.mxu0 %v460
    %769 = vmatprep.subr.mxu0 %v457
    %770 = vmatpush1.msra.mxu0 %v456
    %771 = vmatprep.subr.mxu0 %v453
    %772 = vmatpush1.msra.mxu0 %v452
    %773 = vmatprep.subr.mxu0 %v449
    %774 = vmatpush1.msra.mxu0 %v448
    %775 = vmatprep.subr.mxu0 %v445
    %776 = vmatpush1.msra.mxu0 %v444
    %777 = vmatprep.subr.mxu0 %v441
    %778 = vmatpush1.msra.mxu0 %v440
    %779 = vmatprep.subr.mxu0 %v437
    %780 = vmatpush1.msra.mxu0 %v436
    %781 = vmatprep.subr.mxu0 %v433
    %782 = vmatpush1.msra.mxu0 %v432
    %783 = vmatprep.subr.mxu0 %v429
    %784 = vmatpush1.msra.mxu0 %v428
    %785 = vmatprep.subr.mxu0 %v425
    %786 = vmatpush1.msra.mxu0 %v424
    %787 = vmatprep.subr.mxu0 %v421
    %788 = vmatpush1.msra.mxu0 %v420
    %789 = vmatprep.subr.mxu0 %v417
    %790 = vmatpush1.msra.mxu0 %v416
    %791 = vmatprep.subr.mxu0 %v413
    %792 = vmatpush1.msra.mxu0 %v412
    %793 = vmatprep.subr.mxu0 %v409
    %794 = vmatpush1.msra.mxu0 %v408
    %795 = vmatprep.subr.mxu0 %v405
    %796 = vmatpush1.msra.mxu0 %v404
    %797 = vmatprep.subr.mxu0 %v529
    %798 = vmatpush2.msra.mxu0 %v528
    %799 = vmatprep.subr.mxu0 %v525
    %800 = vmatpush2.msra.mxu0 %v524
    %801 = vmatprep.subr.mxu0 %v521
    %802 = vmatpush2.msra.mxu0 %v520
    %803 = vmatprep.subr.mxu0 %v517
    %804 = vmatpush2.msra.mxu0 %v516
    %805 = vmatprep.subr.mxu0 %v513
    %806 = vmatpush2.msra.mxu0 %v512
    %807 = vmatprep.subr.mxu0 %v509
    %808 = vmatpush2.msra.mxu0 %v508
    %809 = vmatprep.subr.mxu0 %v505
    %810 = vmatpush2.msra.mxu0 %v504
    %811 = vmatprep.subr.mxu0 %v501
    %812 = vmatpush2.msra.mxu0 %v500
    %813 = vmatprep.subr.mxu0 %v497
    %814 = vmatpush2.msra.mxu0 %v496
    %815 = vmatprep.subr.mxu0 %v493
    %816 = vmatpush2.msra.mxu0 %v492
    %817 = vmatprep.subr.mxu0 %v489
    %818 = vmatpush2.msra.mxu0 %v488
    %819 = vmatprep.subr.mxu0 %v485
    %820 = vmatpush2.msra.mxu0 %v484
    %821 = vmatprep.subr.mxu0 %v481
    %822 = vmatpush2.msra.mxu0 %v480
    %823 = vmatprep.subr.mxu0 %v477
    %824 = vmatpush2.msra.mxu0 %v476
    %825 = vmatprep.subr.mxu0 %v473
    %826 = vmatpush2.msra.mxu0 %v472
    %827 = vmatprep.subr.mxu0 %v469
    %828 = vmatpush2.msra.mxu0 %v468
    %829 = vmatprep.mubr.f32.mxu0 %v273
    %830 = vmatmul.mubr.f32.gmra.mxu0 %v272
    %v831 = vpop.f32.mrf.mxu0
    %v832 = vadd.f32 %v761, %v831
    %v833 = vpop.f32.mrf.mxu0
    %v834 = vadd.f32 %v763, %v833
    %835 = vdwg.mxu0
    %v836 = vmax.f32 %v690, 0.0
    %v837 = vmax.f32 %v692, 0.0
    %v838 = vmax.f32 %v832, 0.0
    %v839 = vmax.f32 %v834, 0.0
    %v840 = vld [vmem:[%s5] sm:$0xff]
    %v841 = vld [vmem:[%s5 + $0x8] sm:$0xff]
    %v842 = vld [vmem:[%s5 + $0x10] sm:$0xff]
    %v843 = vld [vmem:[%s5 + $0x18] sm:$0xff]
    %v844 = vld [vmem:[%s5 + $0x20] sm:$0xff]
    %v845 = vld [vmem:[%s5 + $0x28] sm:$0xff]
    %v846 = vld [vmem:[%s5 + $0x30] sm:$0xff]
    %v847 = vld [vmem:[%s5 + $0x38] sm:$0xff]
    %v848 = vld [vmem:[%s5 + $0x40] sm:$0xff]
    %v849 = vld [vmem:[%s5 + $0x48] sm:$0xff]
    %v850 = vld [vmem:[%s5 + $0x50] sm:$0xff]
    %v851 = vld [vmem:[%s5 + $0x58] sm:$0xff]
    %v852 = vld [vmem:[%s5 + $0x60] sm:$0xff]
    %v853 = vld [vmem:[%s5 + $0x68] sm:$0xff]
    %v854 = vld [vmem:[%s5 + $0x70] sm:$0xff]
    %v855 = vld [vmem:[%s5 + $0x78] sm:$0xff]
    %v856 = vld [vmem:[%s5 + $0x80] sm:$0xff]
    %v857 = vld [vmem:[%s5 + $0x88] sm:$0xff]
    %v858 = vld [vmem:[%s5 + $0x90] sm:$0xff]
    %v859 = vld [vmem:[%s5 + $0x98] sm:$0xff]
    %v860 = vld [vmem:[%s5 + $0xa0] sm:$0xff]
    %v861 = vld [vmem:[%s5 + $0xa8] sm:$0xff]
    %v862 = vld [vmem:[%s5 + $0xb0] sm:$0xff]
    %v863 = vld [vmem:[%s5 + $0xb8] sm:$0xff]
    %v864 = vld [vmem:[%s5 + $0xc0] sm:$0xff]
    %v865 = vld [vmem:[%s5 + $0xc8] sm:$0xff]
    %v866 = vld [vmem:[%s5 + $0xd0] sm:$0xff]
    %v867 = vld [vmem:[%s5 + $0xd8] sm:$0xff]
    %v868 = vld [vmem:[%s5 + $0xe0] sm:$0xff]
    %v869 = vld [vmem:[%s5 + $0xe8] sm:$0xff]
    %v870 = vld [vmem:[%s5 + $0xf0] sm:$0xff]
    %v871 = vld [vmem:[%s5 + $0xf8] sm:$0xff]
    %v872 = vld [vmem:[%s5 + $0x100] sm:$0xff]
    %v873 = vld [vmem:[%s5 + $0x108] sm:$0xff]
    %v874 = vld [vmem:[%s5 + $0x110] sm:$0xff]
    %v875 = vld [vmem:[%s5 + $0x118] sm:$0xff]
    %v876 = vld [vmem:[%s5 + $0x120] sm:$0xff]
    %v877 = vld [vmem:[%s5 + $0x128] sm:$0xff]
    %v878 = vld [vmem:[%s5 + $0x130] sm:$0xff]
    %v879 = vld [vmem:[%s5 + $0x138] sm:$0xff]
    %v880 = vld [vmem:[%s5 + $0x140] sm:$0xff]
    %v881 = vld [vmem:[%s5 + $0x148] sm:$0xff]
    %v882 = vld [vmem:[%s5 + $0x150] sm:$0xff]
    %v883 = vld [vmem:[%s5 + $0x158] sm:$0xff]
    %v884 = vld [vmem:[%s5 + $0x160] sm:$0xff]
    %v885 = vld [vmem:[%s5 + $0x168] sm:$0xff]
    %v886 = vld [vmem:[%s5 + $0x170] sm:$0xff]
    %v887 = vld [vmem:[%s5 + $0x178] sm:$0xff]
    %v888 = vld [vmem:[%s5 + $0x180] sm:$0xff]
    %v889 = vld [vmem:[%s5 + $0x188] sm:$0xff]
    %v890 = vld [vmem:[%s5 + $0x190] sm:$0xff]
    %v891 = vld [vmem:[%s5 + $0x198] sm:$0xff]
    %v892 = vld [vmem:[%s5 + $0x1a0] sm:$0xff]
    %v893 = vld [vmem:[%s5 + $0x1a8] sm:$0xff]
    %v894 = vld [vmem:[%s5 + $0x1b0] sm:$0xff]
    %v895 = vld [vmem:[%s5 + $0x1b8] sm:$0xff]
    %v896 = vld [vmem:[%s5 + $0x1c0] sm:$0xff]
    %v897 = vld [vmem:[%s5 + $0x1c8] sm:$0xff]
    %v898 = vld [vmem:[%s5 + $0x1d0] sm:$0xff]
    %v899 = vld [vmem:[%s5 + $0x1d8] sm:$0xff]
    %v900 = vld [vmem:[%s5 + $0x1e0] sm:$0xff]
    %v901 = vld [vmem:[%s5 + $0x1e8] sm:$0xff]
    %v902 = vld [vmem:[%s5 + $0x1f0] sm:$0xff]
    %v903 = vld [vmem:[%s5 + $0x1f8] sm:$0xff]
    %v904 = vld [vmem:[%s6] sm:$0x1]
    %905 = vmatprep.subr.mxu0 0.0
    %906 = vmatpush1.msra.mxu0 %v855
    %907 = vmatprep.subr.mxu0 0.0
    %908 = vmatpush1.msra.mxu0 %v854
    %909 = vmatprep.subr.mxu0 0.0
    %910 = vmatpush1.msra.mxu0 %v853
    %911 = vmatprep.subr.mxu0 0.0
    %912 = vmatpush1.msra.mxu0 %v852
    %913 = vmatprep.subr.mxu0 0.0
    %914 = vmatpush1.msra.mxu0 %v851
    %915 = vmatprep.subr.mxu0 0.0
    %916 = vmatpush1.msra.mxu0 %v850
    %917 = vmatprep.subr.mxu0 0.0
    %918 = vmatpush1.msra.mxu0 %v849
    %919 = vmatprep.subr.mxu0 0.0
    %920 = vmatpush1.msra.mxu0 %v848
    %921 = vmatprep.subr.mxu0 0.0
    %922 = vmatpush1.msra.mxu0 %v847
    %923 = vmatprep.subr.mxu0 0.0
    %924 = vmatpush1.msra.mxu0 %v846
    %925 = vmatprep.subr.mxu0 0.0
    %926 = vmatpush1.msra.mxu0 %v845
    %927 = vmatprep.subr.mxu0 0.0
    %928 = vmatpush1.msra.mxu0 %v844
    %929 = vmatprep.subr.mxu0 0.0
    %930 = vmatpush1.msra.mxu0 %v843
    %931 = vmatprep.subr.mxu0 0.0
    %932 = vmatpush1.msra.mxu0 %v842
    %933 = vmatprep.subr.mxu0 0.0
    %934 = vmatpush1.msra.mxu0 %v841
    %935 = vmatprep.subr.mxu0 0.0
    %936 = vmatpush1.msra.mxu0 %v840
    %937 = vmatprep.subr.mxu0 0.0
    %938 = vmatpush2.msra.mxu0 %v871
    %939 = vmatprep.subr.mxu0 0.0
    %940 = vmatpush2.msra.mxu0 %v870
    %941 = vmatprep.subr.mxu0 0.0
    %942 = vmatpush2.msra.mxu0 %v869
    %943 = vmatprep.subr.mxu0 0.0
    %944 = vmatpush2.msra.mxu0 %v868
    %945 = vmatprep.subr.mxu0 0.0
    %946 = vmatpush2.msra.mxu0 %v867
    %947 = vmatprep.subr.mxu0 0.0
    %948 = vmatpush2.msra.mxu0 %v866
    %949 = vmatprep.subr.mxu0 0.0
    %950 = vmatpush2.msra.mxu0 %v865
    %951 = vmatprep.subr.mxu0 0.0
    %952 = vmatpush2.msra.mxu0 %v864
    %953 = vmatprep.subr.mxu0 0.0
    %954 = vmatpush2.msra.mxu0 %v863
    %955 = vmatprep.subr.mxu0 0.0
    %956 = vmatpush2.msra.mxu0 %v862
    %957 = vmatprep.subr.mxu0 0.0
    %958 = vmatpush2.msra.mxu0 %v861
    %959 = vmatprep.subr.mxu0 0.0
    %960 = vmatpush2.msra.mxu0 %v860
    %961 = vmatprep.subr.mxu0 0.0
    %962 = vmatpush2.msra.mxu0 %v859
    %963 = vmatprep.subr.mxu0 0.0
    %964 = vmatpush2.msra.mxu0 %v858
    %965 = vmatprep.subr.mxu0 0.0
    %966 = vmatpush2.msra.mxu0 %v857
    %967 = vmatprep.subr.mxu0 0.0
    %968 = vmatpush2.msra.mxu0 %v856
    %969 = vmatprep.mubr.f32.mxu0 %v837
    %970 = vmatmul.mubr.f32.gmra.mxu0 %v836
    %v971 = vpop.f32.mrf.mxu0
    %v972 = vadd.f32 %v904, %v971
    %v973 = vpop.f32.mrf.mxu0
    %974 = vdwg.mxu0
    %975 = vmatprep.subr.mxu0 0.0
    %976 = vmatpush1.msra.mxu0 %v887
    %977 = vmatprep.subr.mxu0 0.0
    %978 = vmatpush1.msra.mxu0 %v886
    %979 = vmatprep.subr.mxu0 0.0
    %980 = vmatpush1.msra.mxu0 %v885
    %981 = vmatprep.subr.mxu0 0.0
    %982 = vmatpush1.msra.mxu0 %v884
    %983 = vmatprep.subr.mxu0 0.0
    %984 = vmatpush1.msra.mxu0 %v883
    %985 = vmatprep.subr.mxu0 0.0
    %986 = vmatpush1.msra.mxu0 %v882
    %987 = vmatprep.subr.mxu0 0.0
    %988 = vmatpush1.msra.mxu0 %v881
    %989 = vmatprep.subr.mxu0 0.0
    %990 = vmatpush1.msra.mxu0 %v880
    %991 = vmatprep.subr.mxu0 0.0
    %992 = vmatpush1.msra.mxu0 %v879
    %993 = vmatprep.subr.mxu0 0.0
    %994 = vmatpush1.msra.mxu0 %v878
    %995 = vmatprep.subr.mxu0 0.0
    %996 = vmatpush1.msra.mxu0 %v877
    %997 = vmatprep.subr.mxu0 0.0
    %998 = vmatpush1.msra.mxu0 %v876
    %999 = vmatprep.subr.mxu0 0.0
    %1000 = vmatpush1.msra.mxu0 %v875
    %1001 = vmatprep.subr.mxu0 0.0
    %1002 = vmatpush1.msra.mxu0 %v874
    %1003 = vmatprep.subr.mxu0 0.0
    %1004 = vmatpush1.msra.mxu0 %v873
    %1005 = vmatprep.subr.mxu0 0.0
    %1006 = vmatpush1.msra.mxu0 %v872
    %1007 = vmatprep.subr.mxu0 0.0
    %1008 = vmatpush2.msra.mxu0 %v903
    %1009 = vmatprep.subr.mxu0 0.0
    %1010 = vmatpush2.msra.mxu0 %v902
    %1011 = vmatprep.subr.mxu0 0.0
    %1012 = vmatpush2.msra.mxu0 %v901
    %1013 = vmatprep.subr.mxu0 0.0
    %1014 = vmatpush2.msra.mxu0 %v900
    %1015 = vmatprep.subr.mxu0 0.0
    %1016 = vmatpush2.msra.mxu0 %v899
    %1017 = vmatprep.subr.mxu0 0.0
    %1018 = vmatpush2.msra.mxu0 %v898
    %1019 = vmatprep.subr.mxu0 0.0
    %1020 = vmatpush2.msra.mxu0 %v897
    %1021 = vmatprep.subr.mxu0 0.0
    %1022 = vmatpush2.msra.mxu0 %v896
    %1023 = vmatprep.subr.mxu0 0.0
    %1024 = vmatpush2.msra.mxu0 %v895
    %1025 = vmatprep.subr.mxu0 0.0
    %1026 = vmatpush2.msra.mxu0 %v894
    %1027 = vmatprep.subr.mxu0 0.0
    %1028 = vmatpush2.msra.mxu0 %v893
    %1029 = vmatprep.subr.mxu0 0.0
    %1030 = vmatpush2.msra.mxu0 %v892
    %1031 = vmatprep.subr.mxu0 0.0
    %1032 = vmatpush2.msra.mxu0 %v891
    %1033 = vmatprep.subr.mxu0 0.0
    %1034 = vmatpush2.msra.mxu0 %v890
    %1035 = vmatprep.subr.mxu0 0.0
    %1036 = vmatpush2.msra.mxu0 %v889
    %1037 = vmatprep.subr.mxu0 0.0
    %1038 = vmatpush2.msra.mxu0 %v888
    %1039 = vmatprep.mubr.f32.mxu0 %v839
    %1040 = vmatmul.mubr.f32.gmra.mxu0 %v838
    %v1041 = vpop.f32.mrf.mxu0
    %v1042 = vadd.f32 %v972, %v1041
    %v1043 = vpop.f32.mrf.mxu0
    %1044 = vdwg.mxu0
    %vm1045 = vcmask 122880
    %1046 = vst.msk [vmem:[#allocation5] sm:$0x1] %vm1045, %v1042
    // Predicated region
    $region34: #{tpu_custom_call.1} parent=1 // pred_check
      _
    $region35: #{tpu_custom_call.1} parent=1 // pred_check_branch
      %1048 = sbr.rel (0) target = $region37
    $region36: #{tpu_custom_call.1} parent=1 // pred_region
      %s1050 = ssub.s32 16, 16
      %1051 = vsyncadd [#allocation4], %s1050
      %s1053 = sshll.u32 [#allocation5], 4
      %s1054 = int_to_ptr.vmem [resolvable:$true] %s1053
      %1056 = dma.vmem_to_hbm [thread:$0]  %s1054, 16, %s7, [#allocation4]
    $region37: #{tpu_custom_call.1} parent=1 // pred_fallthru
      _
    // Predicated region
    $region38: #{tpu_custom_call.1} parent=1 // pred_check
      _
    $region39: #{tpu_custom_call.1} parent=1 // pred_check_branch
      %1058 = sbr.rel (0) target = $region41
    $region40: #{tpu_custom_call.1} parent=1 // pred_region
      %1059 = dma.done [#allocation4], 16
    $region41: #{tpu_custom_call.1} parent=1 // pred_fallthru
      _
    %1060 = vsyncpa [#allocation3], 1
    %1061 = vsyncpa [#allocation4], 1

</llo_original>
